<compile_context>
chip_gen: v5e
topology: v5e:2x2
jax: 0.10.0
libtpu: 0.0.40
codegen_flags: <defaults>
</compile_context>

<pallas_src>
import functools

import jax
import jax.numpy as jnp
from jax import lax
from jax.experimental import pallas as pl
from jax.experimental.pallas import tpu as pltpu


def _round_up(x, m):
    return ((x + m - 1) // m) * m


# ---------------------------------------------------------------------------
# Path 1: VMEM-resident tables, one-hot MXU gather, batch on the lane axis.
# ---------------------------------------------------------------------------
def _mf_resident_kernel(u_idx_ref, i_idx_ref, ut_ref, it_ref, out_ref):
    """One grid step handles tile_b batch elements.

    u_idx_ref / i_idx_ref : (1, tile_b) int32 VMEM (clamped row indices)
    ut_ref                : (f_pad, n_users_pad) f32 VMEM (transposed user table)
    it_ref                : (f_pad, n_items_pad) f32 VMEM (transposed item table)
    out_ref               : (1, tile_b) f32 VMEM (lane-dense output block)
    """
    tile_b = out_ref.shape[1]
    nu = ut_ref.shape[1]
    ni = it_ref.shape[1]

    users = u_idx_ref[...]  # (1, tile_b)
    items = i_idx_ref[...]  # (1, tile_b)

    # One-hot selectors: vocab on sublanes, batch on lanes (VPU compare).
    oh_u = (lax.broadcasted_iota(jnp.int32, (nu, tile_b), 0) == users).astype(jnp.float32)
    oh_i = (lax.broadcasted_iota(jnp.int32, (ni, tile_b), 0) == items).astype(jnp.float32)

    # Gather == matmul on the otherwise-idle MXU.  Batch stays on lanes, so the
    # factor reduction below is a sublane reduce straight into (1, tile_b) -
    # no sublane->lane relayout and a single unmasked lane-dense store.
    gu = jnp.dot(ut_ref[...], oh_u, preferred_element_type=jnp.float32)  # (f_pad, tile_b)
    gi = jnp.dot(it_ref[...], oh_i, preferred_element_type=jnp.float32)  # (f_pad, tile_b)

    out_ref[...] = jnp.sum(gu * gi, axis=0, keepdims=True)  # (1, tile_b)


def _forward_resident(users, items, user_w, item_w, tile_b):
    B = users.shape[0]
    n_users, F = user_w.shape
    n_items = item_w.shape[0]

    f_pad = _round_up(F, 8)            # sublane-aligned factor dim (NOT 128)
    nu_pad = _round_up(n_users, 256)   # contraction dim: multiple of 256 (v6e/v7x MXU)
    ni_pad = _round_up(n_items, 256)

    # NOTE: in a real model these transposed/padded tables should be built once
    # at init and cached, not rebuilt per forward call.
    ut = jnp.zeros((f_pad, nu_pad), jnp.float32).at[:F, :n_users].set(
        user_w.astype(jnp.float32).T)
    it = jnp.zeros((f_pad, ni_pad), jnp.float32).at[:F, :n_items].set(
        item_w.astype(jnp.float32).T)

    num_tiles = pl.cdiv(B, tile_b)
    b_pad = num_tiles * tile_b
    u_idx = jnp.zeros((1, b_pad), jnp.int32).at[0, :B].set(users)
    i_idx = jnp.zeros((1, b_pad), jnp.int32).at[0, :B].set(items)

    cost = pl.CostEstimate(
        flops=2 * f_pad * (nu_pad + ni_pad) * b_pad + 2 * f_pad * b_pad,
        transcendentals=0,
        bytes_accessed=(nu_pad + ni_pad) * f_pad * 4 + 3 * b_pad * 4,
    )

    out = pl.pallas_call(
        _mf_resident_kernel,
        out_shape=jax.ShapeDtypeStruct((1, b_pad), jnp.float32),
        grid=(num_tiles,),
        in_specs=[
            pl.BlockSpec((1, tile_b), lambda t: (0, t)),      # user indices
            pl.BlockSpec((1, tile_b), lambda t: (0, t)),      # item indices
            pl.BlockSpec((f_pad, nu_pad), lambda t: (0, 0)),  # resident user table
            pl.BlockSpec((f_pad, ni_pad), lambda t: (0, 0)),  # resident item table
        ],
        out_specs=pl.BlockSpec((1, tile_b), lambda t: (0, t)),
        compiler_params=pltpu.CompilerParams(
            dimension_semantics=("parallel",),      # batch tiles shard across TCs (v7x)
            vmem_limit_bytes=32 * 1024 * 1024,      # valid on v5e/v6e/v7x
        ),
        cost_estimate=cost,
    )(u_idx, i_idx, ut, it)

    return out[0, :B]


# ---------------------------------------------------------------------------
# Path 2: tables stay in HBM, per-row DMA gather (large vocabularies).
# ---------------------------------------------------------------------------
def _mf_hbm_gather_kernel(idx_ref, uw_hbm, iw_hbm, out_ref,
                          u_rows, i_rows, sems, *, n_factors):
    """One grid step handles tile_b batch rows.

    idx_ref : (2, b_pad) int32 SMEM (scalar prefetch); row 0 = users, row 1 = items
    uw_hbm  : (n_users, F) f32 ref left in HBM (unpadded)
    iw_hbm  : (n_items, F) f32 ref left in HBM (unpadded)
    out_ref : (1, tile_b) f32 VMEM block (lane-dense output)
    u_rows  : (tile_b, f_pad) f32 VMEM scratch (gathered user rows, cols [0, F))
    i_rows  : (tile_b, f_pad) f32 VMEM scratch (gathered item rows, cols [0, F))
    sems    : (2,) DMA semaphores (0 = user copies, 1 = item copies)
    """
    tile_b = out_ref.shape[1]
    base = pl.multiple_of(pl.program_id(0) * tile_b, tile_b)

    # Issue all row-gather DMAs for this tile (HBM -> VMEM), only the F real
    # columns per row.  Unrolled so the LLO scheduler can pack SMEM index loads
    # with DMA-descriptor pushes instead of paying loop control per row.
    def issue(r, carry):
        u = idx_ref[0, base + r]
        v = idx_ref[1, base + r]
        pltpu.make_async_copy(
            uw_hbm.at[pl.ds(u, 1), :],
            u_rows.at[pl.ds(r, 1), pl.ds(0, n_factors)],
            sems.at[0],
        ).start()
        pltpu.make_async_copy(
            iw_hbm.at[pl.ds(v, 1), :],
            i_rows.at[pl.ds(r, 1), pl.ds(0, n_factors)],
            sems.at[1],
        ).start()
        return carry

    lax.fori_loop(0, tile_b, issue, 0, unroll=8)

    # Aggregate drain: every issued copy signals its semaphore with its byte
    # count; one wait per semaphore sized to the full gathered region
    # (tile_b * n_factors * 4 bytes) balances all of them -> 2 waits per tile
    # instead of 2*tile_b.
    # TODO(synk): double-buffer the gather scratch across grid steps (pattern
    # P4) to overlap tile t's in-flight DMAs with tile t+1's issue phase.
    pltpu.make_async_copy(
        u_rows.at[pl.ds(0, tile_b), pl.ds(0, n_factors)],
        u_rows.at[pl.ds(0, tile_b), pl.ds(0, n_factors)],
        sems.at[0],
    ).wait()
    pltpu.make_async_copy(
        i_rows.at[pl.ds(0, tile_b), pl.ds(0, n_factors)],
        i_rows.at[pl.ds(0, tile_b), pl.ds(0, n_factors)],
        sems.at[1],
    ).wait()

    # Elementwise product; lane-mask the reduction so the never-written pad
    # columns of the persistent scratch cannot contaminate the sum.
    prod = u_rows[...] * i_rows[...]                       # (tile_b, f_pad)
    lane = lax.broadcasted_iota(jnp.int32, prod.shape, 1)
    masked = jnp.where(lane < n_factors, prod, 0.0)
    out_ref[...] = jnp.sum(masked, axis=1).reshape(1, tile_b)


def _forward_hbm(users, items, user_w, item_w, tile_b):
    B = users.shape[0]
    n_users, F = user_w.shape

    f_pad = _round_up(F, 128)          # scratch lane width only; HBM stays unpadded
    num_tiles = pl.cdiv(B, tile_b)
    b_pad = num_tiles * tile_b
    idx = jnp.zeros((2, b_pad), jnp.int32)
    idx = idx.at[0, :B].set(users).at[1, :B].set(items)

    kernel = functools.partial(_mf_hbm_gather_kernel, n_factors=F)

    grid_spec = pltpu.PrefetchScalarGridSpec(
        num_scalar_prefetch=1,
        grid=(num_tiles,),
        in_specs=[
            pl.BlockSpec(memory_space=pl.ANY),   # user table stays in HBM
            pl.BlockSpec(memory_space=pl.ANY),   # item table stays in HBM
        ],
        out_specs=pl.BlockSpec((1, tile_b), lambda t, idx_p: (0, t)),
        scratch_shapes=[
            pltpu.VMEM((tile_b, f_pad), jnp.float32),
            pltpu.VMEM((tile_b, f_pad), jnp.float32),
            pltpu.SemaphoreType.DMA((2,)),
        ],
    )

    cost = pl.CostEstimate(
        flops=2 * b_pad * f_pad,
        transcendentals=0,
        bytes_accessed=2 * b_pad * F * 4 + 2 * b_pad * 4 + b_pad * 4,
    )

    out = pl.pallas_call(
        kernel,
        out_shape=jax.ShapeDtypeStruct((1, b_pad), jnp.float32),
        grid_spec=grid_spec,
        compiler_params=pltpu.CompilerParams(dimension_semantics=("parallel",)),
        cost_estimate=cost,
    )(idx, user_w.astype(jnp.float32), item_w.astype(jnp.float32))

    return out[0, :B]


# ---------------------------------------------------------------------------
# Dispatcher (generation-safe VMEM budget for the resident path).
# ---------------------------------------------------------------------------
def matrix_factorization_forward(data, user_w, item_w, *, tile_b=512, path="auto"):
    """data: (B, 2) int; user_w: (n_users, F); item_w: (n_items, F) -> (B,) f32."""
    B = data.shape[0]
    n_users, F = user_w.shape
    n_items, F_i = item_w.shape
    assert F == F_i

    # Clamp indices: an OOB index must not turn into an OOB DMA / bad one-hot.
    users = jnp.clip(data[:, 0].astype(jnp.int32), 0, n_users - 1)
    items = jnp.clip(data[:, 1].astype(jnp.int32), 0, n_items - 1)

    # Large tiles amortize the ~0.35us per-grid-step overhead; clamp to the
    # (128-aligned) batch so tiny batches don't over-pad.
    tile = min(_round_up(tile_b, 128), _round_up(max(B, 1), 128))

    if path == "auto":
        f_pad = _round_up(F, 8)
        nu_pad = _round_up(n_users, 256)
        ni_pad = _round_up(n_items, 256)
        table_bytes = (nu_pad + ni_pad) * f_pad * 4
        onehot_bytes = (nu_pad + ni_pad) * tile * 4
        # Conservative cross-generation budget: must fit v7x (64 MiB physical,
        # 32 MiB scoped default) even with double-buffered table blocks.
        use_resident = (2 * table_bytes + onehot_bytes) <= 24 * 1024 * 1024
        path = "resident" if use_resident else "hbm"

    if path == "resident":
        return _forward_resident(users, items, user_w, item_w, tile)
    return _forward_hbm(users, items, user_w, item_w, tile)


if __name__ == "__main__":
    n_users, n_items, n_factors = 16, 32, 20
    batch = 8

    key = jax.random.PRNGKey(0)
    k_uw, k_iw, k_u, k_i = jax.random.split(key, 4)

    # Matches torch: weight.data.uniform_(0, 0.05)
    user_w = jax.random.uniform(k_uw, (n_users, n_factors), jnp.float32, 0.0, 0.05)
    item_w = jax.random.uniform(k_iw, (n_items, n_factors), jnp.float32, 0.0, 0.05)

    users = jax.random.randint(k_u, (batch,), 0, n_users, dtype=jnp.int32)
    items = jax.random.randint(k_i, (batch,), 0, n_items, dtype=jnp.int32)
    data = jnp.stack([users, items], axis=1)  # (B, 2) int32

    # Pure-JAX reference.
    ref = jnp.sum(user_w[data[:, 0]] * item_w[data[:, 1]], axis=1)

    # Fast path (VMEM-resident tables, one-hot MXU gather) — default dispatch.
    out_fast = jax.block_until_ready(matrix_factorization_forward(data, user_w, item_w))
    assert out_fast.shape == (batch,)
    assert jnp.allclose(out_fast, ref, atol=1e-6, rtol=1e-5), (out_fast, ref)

    # Fallback path (HBM per-row DMA gather) — forced, so it is also exercised.
    out_hbm = jax.block_until_ready(
        matrix_factorization_forward(data, user_w, item_w, path="hbm"))
    assert out_hbm.shape == (batch,)
    assert jnp.allclose(out_hbm, ref, atol=1e-6, rtol=1e-5), (out_hbm, ref)

    print("KERNEL_OK")
</pallas_src>

<mosaic_0001>
module attributes {stable_mosaic.version = 11 : i64} {
  func.func @_mf_resident_kernel(%arg0: i32, %arg1: memref<1x128xi32, #tpu.memory_space<vmem>>, %arg2: memref<1x128xi32, #tpu.memory_space<vmem>>, %arg3: memref<24x256xf32, #tpu.memory_space<vmem>>, %arg4: memref<24x256xf32, #tpu.memory_space<vmem>>, %arg5: memref<1x128xf32, #tpu.memory_space<vmem>>) attributes {dimension_semantics = [#tpu.dimension_semantics<parallel>], iteration_bounds = array<i64: 1>, scalar_prefetch = 0 : i64, scratch_operands = 0 : i64, tpu.core_type = #tpu.core_type<tc>, window_params = [{transform_indices = @transform_0, window_bounds = array<i64: 1, 128>}, {transform_indices = @transform_1, window_bounds = array<i64: 1, 128>}, {pipeline_mode = #tpu.pipeline_mode<synchronous>, transform_indices = @transform_2, window_bounds = array<i64: 24, 256>}, {pipeline_mode = #tpu.pipeline_mode<synchronous>, transform_indices = @transform_3, window_bounds = array<i64: 24, 256>}, {transform_indices = @transform_4, window_bounds = array<i64: 1, 128>}]} {
    %c0 = arith.constant 0 : index
    %c0_0 = arith.constant 0 : index
    %0 = vector.load %arg1[%c0, %c0_0] : memref<1x128xi32, #tpu.memory_space<vmem>>, vector<1x128xi32>
    %c0_1 = arith.constant 0 : index
    %c0_2 = arith.constant 0 : index
    %1 = vector.load %arg2[%c0_1, %c0_2] : memref<1x128xi32, #tpu.memory_space<vmem>>, vector<1x128xi32>
    %2 = tpu.iota {dimensions = array<i32: 0>} : vector<256x128xi32>
    %3 = vector.broadcast %0 : vector<1x128xi32> to vector<256x128xi32>
    %4 = arith.cmpi eq, %2, %3 : vector<256x128xi32>
    %5 = arith.extui %4 : vector<256x128xi1> to vector<256x128xi32>
    %6 = arith.sitofp %5 : vector<256x128xi32> to vector<256x128xf32>
    %7 = tpu.iota {dimensions = array<i32: 0>} : vector<256x128xi32>
    %8 = vector.broadcast %1 : vector<1x128xi32> to vector<256x128xi32>
    %9 = arith.cmpi eq, %7, %8 : vector<256x128xi32>
    %10 = arith.extui %9 : vector<256x128xi1> to vector<256x128xi32>
    %11 = arith.sitofp %10 : vector<256x128xi32> to vector<256x128xf32>
    %c0_3 = arith.constant 0 : index
    %c0_4 = arith.constant 0 : index
    %12 = vector.load %arg3[%c0_3, %c0_4] : memref<24x256xf32, #tpu.memory_space<vmem>>, vector<24x256xf32>
    %cst = arith.constant dense<0.000000e+00> : vector<24x128xf32>
    %13 = tpu.matmul %12, %6, %cst {dimension_numbers = #tpu.dot_dimension_numbers<[1], [0], [0], [1], [0, 0, 1, 1], [], []>} : vector<24x256xf32>, vector<256x128xf32>, vector<24x128xf32> -> vector<24x128xf32>
    %c0_5 = arith.constant 0 : index
    %c0_6 = arith.constant 0 : index
    %14 = vector.load %arg4[%c0_5, %c0_6] : memref<24x256xf32, #tpu.memory_space<vmem>>, vector<24x256xf32>
    %cst_7 = arith.constant dense<0.000000e+00> : vector<24x128xf32>
    %15 = tpu.matmul %14, %11, %cst_7 {dimension_numbers = #tpu.dot_dimension_numbers<[1], [0], [0], [1], [0, 0, 1, 1], [], []>} : vector<24x256xf32>, vector<256x128xf32>, vector<24x128xf32> -> vector<24x128xf32>
    %16 = arith.mulf %13, %15 : vector<24x128xf32>
    %cst_8 = arith.constant dense<0.000000e+00> : vector<128xf32>
    %17 = vector.multi_reduction <add>, %16, %cst_8 [0] : vector<24x128xf32> to vector<128xf32>
    %18 = vector.shape_cast %17 : vector<128xf32> to vector<1x128xf32>
    %c0_9 = arith.constant 0 : index
    %c0_10 = arith.constant 0 : index
    %19 = vector.load %arg5[%c0_9, %c0_10] : memref<1x128xf32, #tpu.memory_space<vmem>>, vector<1x128xf32>
    tpu.vector_store %arg5[%c0_9, %c0_10], %18 {strides = array<i32>} : memref<1x128xf32, #tpu.memory_space<vmem>>, vector<1x128xf32>,
    return
  }
  func.func @transform_0(%arg0: i32) -> (i32, i32) {
    %c0_i32 = arith.constant 0 : i32
    %c0_i32_0 = arith.constant 0 : i32
    return %c0_i32, %arg0 : i32, i32
  }
  func.func @transform_1(%arg0: i32) -> (i32, i32) {
    %c0_i32 = arith.constant 0 : i32
    %c0_i32_0 = arith.constant 0 : i32
    return %c0_i32, %arg0 : i32, i32
  }
  func.func @transform_2(%arg0: i32) -> (i32, i32) {
    %c0_i32 = arith.constant 0 : i32
    %c0_i32_0 = arith.constant 0 : i32
    %c0_i32_1 = arith.constant 0 : i32
    return %c0_i32, %c0_i32_0 : i32, i32
  }
  func.func @transform_3(%arg0: i32) -> (i32, i32) {
    %c0_i32 = arith.constant 0 : i32
    %c0_i32_0 = arith.constant 0 : i32
    %c0_i32_1 = arith.constant 0 : i32
    return %c0_i32, %c0_i32_0 : i32, i32
  }
  func.func @transform_4(%arg0: i32) -> (i32, i32) {
    %c0_i32 = arith.constant 0 : i32
    %c0_i32_0 = arith.constant 0 : i32
    return %c0_i32, %arg0 : i32, i32
  }
}

</mosaic_0001>

<llo_original>
// kernel: tpu_custom_call.1
$region0: #{tpu_custom_call.1}
  #allocation0 [shape = 'u32[]', space=smem, size = 0x4, offset = 0x4, fixed_abs, tag = 'smem constant byte address 0x4 - core index']
  #allocation1 [shape = 'u32[72,128]{1,0:T(1,128)}', space=vmem, size = 0x9000, scoped, tag = 'internal scratch']
  %s0 = inlined_call_operand.hbm [shape: s32[1,128], index: 0, kind: input, shape index: {}]
  %s1 = inlined_call_operand.hbm [shape: s32[1,128], index: 1, kind: input, shape index: {}]
  %s2 = inlined_call_operand.hbm [shape: f32[24,256], index: 2, kind: input, shape index: {}]
  %s3 = inlined_call_operand.hbm [shape: f32[24,256], index: 3, kind: input, shape index: {}]
  %s4 = inlined_call_operand.hbm [shape: f32[1,128], index: 4, kind: output, shape index: {}]
  %s5 = sld [smem:[#allocation0]]
  $region42: #{tpu_custom_call.1} parent=0
    _
  %s7 = ssub.s32 1, %s5
  %s8 = scalar_select 0, %s7, %s5
  $region1: #{tpu_custom_call.1} parent=0
    #allocation2 [shape = 'u8[512]{0}', space=vmem, size = 0x400, scoped, tag = 'input window, operand 0, single buffered']
    #allocation3 [shape = 's32[1]{0}', space=sflag, size = 0x4, scoped, tag = 'scoped memory for tpu_custom_call.1']
    #allocation4 [shape = 's32[1]{0}', space=sflag, size = 0x4, scoped, tag = 'scoped memory for tpu_custom_call.1']
    #allocation5 [shape = 'u8[512]{0}', space=vmem, size = 0x400, scoped, tag = 'input window, operand 1, single buffered']
    #allocation6 [shape = 's32[1]{0}', space=sflag, size = 0x4, scoped, tag = 'scoped memory for tpu_custom_call.1']
    #allocation7 [shape = 'u8[24576]{0}', space=vmem, size = 0x6000, scoped, tag = 'input window, operand 2, single buffered']
    #allocation8 [shape = 'u8[24576]{0}', space=vmem, size = 0x6000, scoped, tag = 'input window, operand 3, single buffered']
    #allocation9 [shape = 's32[1]{0}', space=sflag, size = 0x4, scoped, tag = 'scoped memory for tpu_custom_call.1']
    #allocation10 [shape = 'u8[512]{0}', space=vmem, size = 0x400, scoped, tag = 'output window, operand 0, single buffered']
    %9 = vsyncpa [#allocation3], 0
    %10 = vsyncpa [#allocation6], 0
    %11 = vsyncpa [#allocation9], 0
    %12 = vsyncpa [#allocation4], 0
    // Predicated region
    $region2: #{tpu_custom_call.1} parent=1 // pred_check
      _
    $region3: #{tpu_custom_call.1} parent=1 // pred_check_branch
      %14 = sbr.rel (0) target = $region5
    $region4: #{tpu_custom_call.1} parent=1 // pred_region
      %16 = vsyncadd [#allocation3], 0
      %s18 = sshll.u32 %s0, 4
      %s19 = int_to_ptr.hbm [resolvable:$true] %s18
      %s20 = sshll.u32 [#allocation2], 4
      %s21 = int_to_ptr.vmem [resolvable:$true] %s20
      %23 = dma.hbm_to_vmem [thread:$0]  %s19, 16, %s21, [#allocation3]
    $region5: #{tpu_custom_call.1} parent=1 // pred_fallthru
      _
    // Predicated region
    $region6: #{tpu_custom_call.1} parent=1 // pred_check
      _
    $region7: #{tpu_custom_call.1} parent=1 // pred_check_branch
      %25 = sbr.rel (0) target = $region9
    $region8: #{tpu_custom_call.1} parent=1 // pred_region
      %27 = vsyncadd [#allocation6], 0
      %s29 = sshll.u32 %s1, 4
      %s30 = int_to_ptr.hbm [resolvable:$true] %s29
      %s31 = sshll.u32 [#allocation5], 4
      %s32 = int_to_ptr.vmem [resolvable:$true] %s31
      %34 = dma.hbm_to_vmem [thread:$0]  %s30, 16, %s32, [#allocation6]
    $region9: #{tpu_custom_call.1} parent=1 // pred_fallthru
      _
    // Predicated region
    $region10: #{tpu_custom_call.1} parent=1 // pred_check
      _
    $region11: #{tpu_custom_call.1} parent=1 // pred_check_branch
      %36 = sbr.rel (0) target = $region13
    $region12: #{tpu_custom_call.1} parent=1 // pred_region
      %38 = vsyncadd [#allocation6], 0
      %s39 = sshll.u32 %s2, 4
      %s40 = int_to_ptr.hbm [resolvable:$true] %s39
      %s41 = sshll.u32 [#allocation7], 4
      %s42 = int_to_ptr.vmem [resolvable:$true] %s41
      %47 = dma.hbm_to_vmem [thread:$0]  %s40, 768, %s42, [#allocation6], 256, 256, 16
    $region13: #{tpu_custom_call.1} parent=1 // pred_fallthru
      _
    // Predicated region
    $region14: #{tpu_custom_call.1} parent=1 // pred_check
      _
    $region15: #{tpu_custom_call.1} parent=1 // pred_check_branch
      %49 = sbr.rel (0) target = $region17
    $region16: #{tpu_custom_call.1} parent=1 // pred_region
      %51 = vsyncadd [#allocation9], 0
      %s52 = sshll.u32 %s3, 4
      %s53 = int_to_ptr.hbm [resolvable:$true] %s52
      %s54 = sshll.u32 [#allocation8], 4
      %s55 = int_to_ptr.vmem [resolvable:$true] %s54
      %60 = dma.hbm_to_vmem [thread:$0]  %s53, 768, %s55, [#allocation9], 256, 256, 16
    $region17: #{tpu_custom_call.1} parent=1 // pred_fallthru
      _
    // Predicated region
    $region18: #{tpu_custom_call.1} parent=1 // pred_check
      _
    $region19: #{tpu_custom_call.1} parent=1 // pred_check_branch
      %62 = sbr.rel (0) target = $region21
    $region20: #{tpu_custom_call.1} parent=1 // pred_region
      %64 = dma.done [#allocation3], 16
    $region21: #{tpu_custom_call.1} parent=1 // pred_fallthru
      _
    // Predicated region
    $region22: #{tpu_custom_call.1} parent=1 // pred_check
      _
    $region23: #{tpu_custom_call.1} parent=1 // pred_check_branch
      %66 = sbr.rel (0) target = $region25
    $region24: #{tpu_custom_call.1} parent=1 // pred_region
      %68 = dma.done [#allocation6], 16
    $region25: #{tpu_custom_call.1} parent=1 // pred_fallthru
      _
    // Predicated region
    $region26: #{tpu_custom_call.1} parent=1 // pred_check
      _
    $region27: #{tpu_custom_call.1} parent=1 // pred_check_branch
      %70 = sbr.rel (0) target = $region29
    $region28: #{tpu_custom_call.1} parent=1 // pred_region
      %72 = dma.done [#allocation6], 768
    $region29: #{tpu_custom_call.1} parent=1 // pred_fallthru
      _
    // Predicated region
    $region30: #{tpu_custom_call.1} parent=1 // pred_check
      _
    $region31: #{tpu_custom_call.1} parent=1 // pred_check_branch
      %74 = sbr.rel (0) target = $region33
    $region32: #{tpu_custom_call.1} parent=1 // pred_region
      %76 = dma.done [#allocation9], 768
    $region33: #{tpu_custom_call.1} parent=1 // pred_fallthru
      _
    %v77 = vld [vmem:[#allocation2] sm:$0x1]
    %v78 = vld [vmem:[#allocation5] sm:$0x1]
    %v79 = vlaneseq
    %v80 = vshrl.u32 %v79, 7
    %v81 = vadd.s32 %v80, 8
    %v82 = vadd.s32 %v80, 16
    %v83 = vadd.s32 %v80, 24
    %v84 = vadd.s32 %v80, 32
    %v85 = vadd.s32 %v80, 40
    %v86 = vadd.s32 %v80, 48
    %v87 = vadd.s32 %v80, 56
    %v88 = vadd.s32 %v80, 64
    %v89 = vadd.s32 %v80, 72
    %v90 = vadd.s32 %v80, 80
    %v91 = vadd.s32 %v80, 88
    %v92 = vadd.s32 %v80, 96
    %v93 = vadd.s32 %v80, 104
    %v94 = vadd.s32 %v80, 112
    %v95 = vadd.s32 %v80, 120
    %v96 = vadd.s32 %v80, 128
    %v97 = vadd.s32 %v80, 136
    %v98 = vadd.s32 %v80, 144
    %v99 = vadd.s32 %v80, 152
    %v100 = vadd.s32 %v80, 160
    %v101 = vadd.s32 %v80, 168
    %v102 = vadd.s32 %v80, 176
    %v103 = vadd.s32 %v80, 184
    %v104 = vadd.s32 %v80, 192
    %v105 = vadd.s32 %v80, 200
    %v106 = vadd.s32 %v80, 208
    %v107 = vadd.s32 %v80, 216
    %v108 = vadd.s32 %v80, 224
    %v109 = vadd.s32 %v80, 232
    %v110 = vadd.s32 %v80, 240
    %v111 = vadd.s32 %v80, 248
    %v112 = vperm.slane %v77, 0
    %vm113 = vcmp.eq.s32.totalorder %v80, %v112
    %vm114 = vcmp.eq.s32.totalorder %v81, %v112
    %vm115 = vcmp.eq.s32.totalorder %v82, %v112
    %vm116 = vcmp.eq.s32.totalorder %v83, %v112
    %vm117 = vcmp.eq.s32.totalorder %v84, %v112
    %vm118 = vcmp.eq.s32.totalorder %v85, %v112
    %vm119 = vcmp.eq.s32.totalorder %v86, %v112
    %vm120 = vcmp.eq.s32.totalorder %v87, %v112
    %vm121 = vcmp.eq.s32.totalorder %v88, %v112
    %vm122 = vcmp.eq.s32.totalorder %v89, %v112
    %vm123 = vcmp.eq.s32.totalorder %v90, %v112
    %vm124 = vcmp.eq.s32.totalorder %v91, %v112
    %vm125 = vcmp.eq.s32.totalorder %v92, %v112
    %vm126 = vcmp.eq.s32.totalorder %v93, %v112
    %vm127 = vcmp.eq.s32.totalorder %v94, %v112
    %vm128 = vcmp.eq.s32.totalorder %v95, %v112
    %vm129 = vcmp.eq.s32.totalorder %v96, %v112
    %vm130 = vcmp.eq.s32.totalorder %v97, %v112
    %vm131 = vcmp.eq.s32.totalorder %v98, %v112
    %vm132 = vcmp.eq.s32.totalorder %v99, %v112
    %vm133 = vcmp.eq.s32.totalorder %v100, %v112
    %vm134 = vcmp.eq.s32.totalorder %v101, %v112
    %vm135 = vcmp.eq.s32.totalorder %v102, %v112
    %vm136 = vcmp.eq.s32.totalorder %v103, %v112
    %vm137 = vcmp.eq.s32.totalorder %v104, %v112
    %vm138 = vcmp.eq.s32.totalorder %v105, %v112
    %vm139 = vcmp.eq.s32.totalorder %v106, %v112
    %vm140 = vcmp.eq.s32.totalorder %v107, %v112
    %vm141 = vcmp.eq.s32.totalorder %v108, %v112
    %vm142 = vcmp.eq.s32.totalorder %v109, %v112
    %vm143 = vcmp.eq.s32.totalorder %v110, %v112
    %vm144 = vcmp.eq.s32.totalorder %v111, %v112
    %v145 = vsel %vm113, 1, 0
    %v146 = vsel %vm114, 1, 0
    %v147 = vsel %vm115, 1, 0
    %v148 = vsel %vm116, 1, 0
    %v149 = vsel %vm117, 1, 0
    %v150 = vsel %vm118, 1, 0
    %v151 = vsel %vm119, 1, 0
    %v152 = vsel %vm120, 1, 0
    %v153 = vsel %vm121, 1, 0
    %v154 = vsel %vm122, 1, 0
    %v155 = vsel %vm123, 1, 0
    %v156 = vsel %vm124, 1, 0
    %v157 = vsel %vm125, 1, 0
    %v158 = vsel %vm126, 1, 0
    %v159 = vsel %vm127, 1, 0
    %v160 = vsel %vm128, 1, 0
    %v161 = vsel %vm129, 1, 0
    %v162 = vsel %vm130, 1, 0
    %v163 = vsel %vm131, 1, 0
    %v164 = vsel %vm132, 1, 0
    %v165 = vsel %vm133, 1, 0
    %v166 = vsel %vm134, 1, 0
    %v167 = vsel %vm135, 1, 0
    %v168 = vsel %vm136, 1, 0
    %v169 = vsel %vm137, 1, 0
    %v170 = vsel %vm138, 1, 0
    %v171 = vsel %vm139, 1, 0
    %v172 = vsel %vm140, 1, 0
    %v173 = vsel %vm141, 1, 0
    %v174 = vsel %vm142, 1, 0
    %v175 = vsel %vm143, 1, 0
    %v176 = vsel %vm144, 1, 0
    %v177 = vcvt.s32.f32 %v145
    %v178 = vcvt.s32.f32 %v146
    %v179 = vcvt.s32.f32 %v147
    %v180 = vcvt.s32.f32 %v148
    %v181 = vcvt.s32.f32 %v149
    %v182 = vcvt.s32.f32 %v150
    %v183 = vcvt.s32.f32 %v151
    %v184 = vcvt.s32.f32 %v152
    %v185 = vcvt.s32.f32 %v153
    %v186 = vcvt.s32.f32 %v154
    %v187 = vcvt.s32.f32 %v155
    %v188 = vcvt.s32.f32 %v156
    %v189 = vcvt.s32.f32 %v157
    %v190 = vcvt.s32.f32 %v158
    %v191 = vcvt.s32.f32 %v159
    %v192 = vcvt.s32.f32 %v160
    %v193 = vcvt.s32.f32 %v161
    %v194 = vcvt.s32.f32 %v162
    %v195 = vcvt.s32.f32 %v163
    %v196 = vcvt.s32.f32 %v164
    %v197 = vcvt.s32.f32 %v165
    %v198 = vcvt.s32.f32 %v166
    %v199 = vcvt.s32.f32 %v167
    %v200 = vcvt.s32.f32 %v168
    %v201 = vcvt.s32.f32 %v169
    %v202 = vcvt.s32.f32 %v170
    %v203 = vcvt.s32.f32 %v171
    %v204 = vcvt.s32.f32 %v172
    %v205 = vcvt.s32.f32 %v173
    %v206 = vcvt.s32.f32 %v174
    %v207 = vcvt.s32.f32 %v175
    %v208 = vcvt.s32.f32 %v176
    %v209 = vperm.slane %v78, 0
    %vm210 = vcmp.eq.s32.totalorder %v80, %v209
    %vm211 = vcmp.eq.s32.totalorder %v81, %v209
    %vm212 = vcmp.eq.s32.totalorder %v82, %v209
    %vm213 = vcmp.eq.s32.totalorder %v83, %v209
    %vm214 = vcmp.eq.s32.totalorder %v84, %v209
    %vm215 = vcmp.eq.s32.totalorder %v85, %v209
    %vm216 = vcmp.eq.s32.totalorder %v86, %v209
    %vm217 = vcmp.eq.s32.totalorder %v87, %v209
    %vm218 = vcmp.eq.s32.totalorder %v88, %v209
    %vm219 = vcmp.eq.s32.totalorder %v89, %v209
    %vm220 = vcmp.eq.s32.totalorder %v90, %v209
    %vm221 = vcmp.eq.s32.totalorder %v91, %v209
    %vm222 = vcmp.eq.s32.totalorder %v92, %v209
    %vm223 = vcmp.eq.s32.totalorder %v93, %v209
    %vm224 = vcmp.eq.s32.totalorder %v94, %v209
    %vm225 = vcmp.eq.s32.totalorder %v95, %v209
    %vm226 = vcmp.eq.s32.totalorder %v96, %v209
    %vm227 = vcmp.eq.s32.totalorder %v97, %v209
    %vm228 = vcmp.eq.s32.totalorder %v98, %v209
    %vm229 = vcmp.eq.s32.totalorder %v99, %v209
    %vm230 = vcmp.eq.s32.totalorder %v100, %v209
    %vm231 = vcmp.eq.s32.totalorder %v101, %v209
    %vm232 = vcmp.eq.s32.totalorder %v102, %v209
    %vm233 = vcmp.eq.s32.totalorder %v103, %v209
    %vm234 = vcmp.eq.s32.totalorder %v104, %v209
    %vm235 = vcmp.eq.s32.totalorder %v105, %v209
    %vm236 = vcmp.eq.s32.totalorder %v106, %v209
    %vm237 = vcmp.eq.s32.totalorder %v107, %v209
    %vm238 = vcmp.eq.s32.totalorder %v108, %v209
    %vm239 = vcmp.eq.s32.totalorder %v109, %v209
    %vm240 = vcmp.eq.s32.totalorder %v110, %v209
    %vm241 = vcmp.eq.s32.totalorder %v111, %v209
    %v242 = vsel %vm210, 1, 0
    %v243 = vsel %vm211, 1, 0
    %v244 = vsel %vm212, 1, 0
    %v245 = vsel %vm213, 1, 0
    %v246 = vsel %vm214, 1, 0
    %v247 = vsel %vm215, 1, 0
    %v248 = vsel %vm216, 1, 0
    %v249 = vsel %vm217, 1, 0
    %v250 = vsel %vm218, 1, 0
    %v251 = vsel %vm219, 1, 0
    %v252 = vsel %vm220, 1, 0
    %v253 = vsel %vm221, 1, 0
    %v254 = vsel %vm222, 1, 0
    %v255 = vsel %vm223, 1, 0
    %v256 = vsel %vm224, 1, 0
    %v257 = vsel %vm225, 1, 0
    %v258 = vsel %vm226, 1, 0
    %v259 = vsel %vm227, 1, 0
    %v260 = vsel %vm228, 1, 0
    %v261 = vsel %vm229, 1, 0
    %v262 = vsel %vm230, 1, 0
    %v263 = vsel %vm231, 1, 0
    %v264 = vsel %vm232, 1, 0
    %v265 = vsel %vm233, 1, 0
    %v266 = vsel %vm234, 1, 0
    %v267 = vsel %vm235, 1, 0
    %v268 = vsel %vm236, 1, 0
    %v269 = vsel %vm237, 1, 0
    %v270 = vsel %vm238, 1, 0
    %v271 = vsel %vm239, 1, 0
    %v272 = vsel %vm240, 1, 0
    %v273 = vsel %vm241, 1, 0
    %v274 = vcvt.s32.f32 %v242
    %v275 = vcvt.s32.f32 %v243
    %v276 = vcvt.s32.f32 %v244
    %v277 = vcvt.s32.f32 %v245
    %v278 = vcvt.s32.f32 %v246
    %v279 = vcvt.s32.f32 %v247
    %v280 = vcvt.s32.f32 %v248
    %v281 = vcvt.s32.f32 %v249
    %v282 = vcvt.s32.f32 %v250
    %v283 = vcvt.s32.f32 %v251
    %v284 = vcvt.s32.f32 %v252
    %v285 = vcvt.s32.f32 %v253
    %v286 = vcvt.s32.f32 %v254
    %v287 = vcvt.s32.f32 %v255
    %v288 = vcvt.s32.f32 %v256
    %v289 = vcvt.s32.f32 %v257
    %v290 = vcvt.s32.f32 %v258
    %v291 = vcvt.s32.f32 %v259
    %v292 = vcvt.s32.f32 %v260
    %v293 = vcvt.s32.f32 %v261
    %v294 = vcvt.s32.f32 %v262
    %v295 = vcvt.s32.f32 %v263
    %v296 = vcvt.s32.f32 %v264
    %v297 = vcvt.s32.f32 %v265
    %v298 = vcvt.s32.f32 %v266
    %v299 = vcvt.s32.f32 %v267
    %v300 = vcvt.s32.f32 %v268
    %v301 = vcvt.s32.f32 %v269
    %v302 = vcvt.s32.f32 %v270
    %v303 = vcvt.s32.f32 %v271
    %v304 = vcvt.s32.f32 %v272
    %v305 = vcvt.s32.f32 %v273
    %v306 = vld [vmem:[#allocation7] sm:$0xff]
    %v307 = vld [vmem:[#allocation7 + $0x8] sm:$0xff]
    %v308 = vld [vmem:[#allocation7 + $0x10] sm:$0xff]
    %v309 = vld [vmem:[#allocation7 + $0x18] sm:$0xff]
    %v310 = vld [vmem:[#allocation7 + $0x20] sm:$0xff]
    %v311 = vld [vmem:[#allocation7 + $0x28] sm:$0xff]
    %312 = vmatpush.msra.mxu0 %v192
    %313 = vmatpush.msra.mxu0 %v191
    %314 = vmatpush.msra.mxu0 %v190
    %315 = vmatpush.msra.mxu0 %v189
    %316 = vmatpush.msra.mxu0 %v188
    %317 = vmatpush.msra.mxu0 %v187
    %318 = vmatpush.msra.mxu0 %v186
    %319 = vmatpush.msra.mxu0 %v185
    %320 = vmatpush.msra.mxu0 %v184
    %321 = vmatpush.msra.mxu0 %v183
    %322 = vmatpush.msra.mxu0 %v182
    %323 = vmatpush.msra.mxu0 %v181
    %324 = vmatpush.msra.mxu0 %v180
    %325 = vmatpush.msra.mxu0 %v179
    %326 = vmatpush.msra.mxu0 %v178
    %327 = vmatpush.msra.mxu0 %v177
    %328 = vmatmul.f32.gmra.mxu0 %v306
    %v329 = vpop.f32.mrf.mxu0
    %v330 = vadd.f32 0.0, %v329
    %331 = vmatmul.f32.gmra.mxu0 %v308
    %v332 = vpop.f32.mrf.mxu0
    %v333 = vadd.f32 0.0, %v332
    %334 = vmatmul.f32.gmra.mxu0 %v310
    %v335 = vpop.f32.mrf.mxu0
    %v336 = vadd.f32 0.0, %v335
    %337 = vdwg.mxu0
    %338 = vmatpush.msra.mxu0 %v208
    %339 = vmatpush.msra.mxu0 %v207
    %340 = vmatpush.msra.mxu0 %v206
    %341 = vmatpush.msra.mxu0 %v205
    %342 = vmatpush.msra.mxu0 %v204
    %343 = vmatpush.msra.mxu0 %v203
    %344 = vmatpush.msra.mxu0 %v202
    %345 = vmatpush.msra.mxu0 %v201
    %346 = vmatpush.msra.mxu0 %v200
    %347 = vmatpush.msra.mxu0 %v199
    %348 = vmatpush.msra.mxu0 %v198
    %349 = vmatpush.msra.mxu0 %v197
    %350 = vmatpush.msra.mxu0 %v196
    %351 = vmatpush.msra.mxu0 %v195
    %352 = vmatpush.msra.mxu0 %v194
    %353 = vmatpush.msra.mxu0 %v193
    %354 = vmatmul.f32.gmra.mxu0 %v307
    %v355 = vpop.f32.mrf.mxu0
    %v356 = vadd.f32 %v330, %v355
    %357 = vmatmul.f32.gmra.mxu0 %v309
    %v358 = vpop.f32.mrf.mxu0
    %v359 = vadd.f32 %v333, %v358
    %360 = vmatmul.f32.gmra.mxu0 %v311
    %v361 = vpop.f32.mrf.mxu0
    %v362 = vadd.f32 %v336, %v361
    %363 = vdwg.mxu0
    %v364 = vld [vmem:[#allocation8] sm:$0xff]
    %v365 = vld [vmem:[#allocation8 + $0x8] sm:$0xff]
    %v366 = vld [vmem:[#allocation8 + $0x10] sm:$0xff]
    %v367 = vld [vmem:[#allocation8 + $0x18] sm:$0xff]
    %v368 = vld [vmem:[#allocation8 + $0x20] sm:$0xff]
    %v369 = vld [vmem:[#allocation8 + $0x28] sm:$0xff]
    %370 = vmatpush.msra.mxu0 %v289
    %371 = vmatpush.msra.mxu0 %v288
    %372 = vmatpush.msra.mxu0 %v287
    %373 = vmatpush.msra.mxu0 %v286
    %374 = vmatpush.msra.mxu0 %v285
    %375 = vmatpush.msra.mxu0 %v284
    %376 = vmatpush.msra.mxu0 %v283
    %377 = vmatpush.msra.mxu0 %v282
    %378 = vmatpush.msra.mxu0 %v281
    %379 = vmatpush.msra.mxu0 %v280
    %380 = vmatpush.msra.mxu0 %v279
    %381 = vmatpush.msra.mxu0 %v278
    %382 = vmatpush.msra.mxu0 %v277
    %383 = vmatpush.msra.mxu0 %v276
    %384 = vmatpush.msra.mxu0 %v275
    %385 = vmatpush.msra.mxu0 %v274
    %386 = vmatmul.f32.gmra.mxu0 %v364
    %v387 = vpop.f32.mrf.mxu0
    %v388 = vadd.f32 0.0, %v387
    %389 = vmatmul.f32.gmra.mxu0 %v366
    %v390 = vpop.f32.mrf.mxu0
    %v391 = vadd.f32 0.0, %v390
    %392 = vmatmul.f32.gmra.mxu0 %v368
    %v393 = vpop.f32.mrf.mxu0
    %v394 = vadd.f32 0.0, %v393
    %395 = vdwg.mxu0
    %396 = vmatpush.msra.mxu0 %v305
    %397 = vmatpush.msra.mxu0 %v304
    %398 = vmatpush.msra.mxu0 %v303
    %399 = vmatpush.msra.mxu0 %v302
    %400 = vmatpush.msra.mxu0 %v301
    %401 = vmatpush.msra.mxu0 %v300
    %402 = vmatpush.msra.mxu0 %v299
    %403 = vmatpush.msra.mxu0 %v298
    %404 = vmatpush.msra.mxu0 %v297
    %405 = vmatpush.msra.mxu0 %v296
    %406 = vmatpush.msra.mxu0 %v295
    %407 = vmatpush.msra.mxu0 %v294
    %408 = vmatpush.msra.mxu0 %v293
    %409 = vmatpush.msra.mxu0 %v292
    %410 = vmatpush.msra.mxu0 %v291
    %411 = vmatpush.msra.mxu0 %v290
    %412 = vmatmul.f32.gmra.mxu0 %v365
    %v413 = vpop.f32.mrf.mxu0
    %v414 = vadd.f32 %v388, %v413
    %415 = vmatmul.f32.gmra.mxu0 %v367
    %v416 = vpop.f32.mrf.mxu0
    %v417 = vadd.f32 %v391, %v416
    %418 = vmatmul.f32.gmra.mxu0 %v369
    %v419 = vpop.f32.mrf.mxu0
    %v420 = vadd.f32 %v394, %v419
    %421 = vdwg.mxu0
    %v422 = vmul.f32 %v356, %v414
    %v423 = vmul.f32 %v359, %v417
    %v424 = vmul.f32 %v362, %v420
    %v425 = vadd.f32 %v422, %v423
    %v426 = vadd.f32 %v425, %v424
    %v427 = vrot.slane %v426, 4
    %v428 = vadd.f32 %v426, %v427
    %v429 = vrot.slane %v428, 2
    %v430 = vadd.f32 %v428, %v429
    %v431 = vrot.slane %v430, 1
    %v432 = vadd.f32 %v430, %v431
    %433 = vst [vmem:[#allocation10] sm:$0x1] %v432
    // Predicated region
    $region34: #{tpu_custom_call.1} parent=1 // pred_check
      _
    $region35: #{tpu_custom_call.1} parent=1 // pred_check_branch
      %435 = sbr.rel (0) target = $region37
    $region36: #{tpu_custom_call.1} parent=1 // pred_region
      %437 = vsyncadd [#allocation4], 0
      %s439 = sshll.u32 [#allocation10], 4
      %s440 = int_to_ptr.vmem [resolvable:$true] %s439
      %s441 = sshll.u32 %s4, 4
      %s442 = int_to_ptr.hbm [resolvable:$true] %s441
      %444 = dma.vmem_to_hbm [thread:$0]  %s440, 16, %s442, [#allocation4]
    $region37: #{tpu_custom_call.1} parent=1 // pred_fallthru
      _
    // Predicated region
    $region38: #{tpu_custom_call.1} parent=1 // pred_check
      _
    $region39: #{tpu_custom_call.1} parent=1 // pred_check_branch
      %446 = sbr.rel (0) target = $region41
    $region40: #{tpu_custom_call.1} parent=1 // pred_region
      %448 = dma.done [#allocation4], 16
    $region41: #{tpu_custom_call.1} parent=1 // pred_fallthru
      _
    %449 = vsyncpa [#allocation3], 1
    %450 = vsyncpa [#allocation6], 1
    %451 = vsyncpa [#allocation9], 1
    %452 = vsyncpa [#allocation4], 1

</llo_original>
